<compile_context>
chip_gen: v7x
topology: tpu7x:2x2x1
jax: 0.10.0
libtpu: 0.0.40
codegen_flags: <defaults>
</compile_context>

<pallas_src>
import math

import jax
import jax.numpy as jnp
from jax.experimental import pallas as pl
from jax.experimental.pallas import tpu as pltpu


def _round_up(x, m):
    return (x + m - 1) // m * m


def _pad_to(arr, shape):
    """Zero-pad `arr` up to `shape`; no-op (no copy) when already that shape."""
    if tuple(arr.shape) == tuple(shape):
        return arr
    pads = [(0, t - s) for s, t in zip(arr.shape, shape)]
    return jnp.pad(arr, pads)


def _gcn_kernel(a_ref, x_ref, w_ref, b_ref, o_ref, xw_ref):
    """One grid step.

    a_ref : (BB, TM, Np)   bf16  row tile of A for BB graphs
    x_ref : (BB*Np, Dp)    bf16  flattened node features (constant across row tiles)
    w_ref : (Dp, Op)       bf16  transposed Linear weight (resident, constant index)
    b_ref : (1, Op)        f32   Linear bias
    o_ref : (BB, TM, Op)   f32   output row tile
    xw_ref: (BB, Np, Op)   bf16  VMEM scratch holding x0 @ W for this batch block
    """
    BB, Np, Op = xw_ref.shape

    # TODO(synk): dropout is identity here (eval mode); training-mode dropout would
    # use pltpu.prng_seed + pltpu.stateful_bernoulli on x_ref before the matmul.

    # Linear part, computed once per batch block (row-tile index == 0):
    # lane-dense (BB*Np, Din) @ (Din, Dout) MXU matmul, bf16 in / f32 accumulate.
    @pl.when(pl.program_id(1) == 0)
    def _():
        xw = jnp.dot(x_ref[...], w_ref[...], preferred_element_type=jnp.float32)
        xw_ref[...] = xw.reshape(BB, Np, Op).astype(xw_ref.dtype)

    # Neighborhood aggregation for this row tile:  A_rows @ (x0 W), f32 accumulate.
    ax = jnp.einsum("bij,bjd->bid", a_ref[...], xw_ref[...],
                    preferred_element_type=jnp.float32)

    x = ax + b_ref[...]
    # activation(x) - 2/(x^2 + 1): tanh and the approx reciprocal both run on the
    # otherwise-idle EUP slot; everything here is f32.
    o_ref[...] = (jnp.tanh(x)
                  - 2.0 * pl.reciprocal(x * x + 1.0, approx=True)).astype(o_ref.dtype)


# VMEM budget used to size blocks (double-buffered inputs/output + scratch).
# Conservative across generations: fits v7x (64 MiB physical per TC) with headroom
# and is backed by an explicit scoped-VMEM limit (v5e default would be only 16 MiB).
_VMEM_BLOCK_BUDGET = 24 * 1024 * 1024
_VMEM_LIMIT_BYTES = 40 * 1024 * 1024


def _choose_tiling(B, N_pad, Din_pad, Dout_pad):
    """Pick (block_b, row_tile) from the VMEM budget and grid-step heuristics."""
    bf16, f32 = 2, 4

    def footprint(bb, tm):
        a = 2 * bb * tm * N_pad * bf16            # A row tile, double buffered
        x = 2 * bb * N_pad * Din_pad * bf16       # flattened features
        w = 2 * Din_pad * Dout_pad * bf16         # resident weight (still 2 buffers)
        bias = 2 * Dout_pad * f32
        out = 2 * bb * tm * Dout_pad * f32        # f32 output tile
        xw = bb * N_pad * Dout_pad * bf16         # scratch (single buffer)
        return a + x + w + bias + out + xw

    fixed = footprint(0, 0)
    per_graph = max(1, footprint(1, N_pad) - fixed)
    bb_vmem = max(1, (_VMEM_BLOCK_BUDGET - fixed) // per_graph)
    bb_steps = max(1, -(-B // 4))                  # aim for >= 4 grid steps (2 per v7x TC)
    cap = int(max(1, min(bb_vmem, bb_steps, B)))

    # Prefer a divisor of B so A / x0 never need batch padding (no extra HBM copy of A).
    block_b = 1
    for d in range(cap, 0, -1):
        if B % d == 0:
            block_b = d
            break

    # Row-tile A only when even a single graph's full-A block exceeds the budget
    # (large N, most relevant on v7x's 64 MiB VMEM).
    tm = N_pad
    if footprint(block_b, N_pad) > _VMEM_BLOCK_BUDGET:
        block_b = 1
        tm = 16
        for cand in range(N_pad, 0, -16):
            if N_pad % cand == 0 and footprint(1, cand) <= _VMEM_BLOCK_BUDGET:
                tm = cand
                break
    return block_b, tm


def gcn_forward(A, x0, W_t, bias):
    """GCN forward.  A: [B,N,N], x0: [B,N,Din], W_t: [Din,Dout] (Linear weight^T), bias: [Dout]."""
    B, N, _ = A.shape
    Din = x0.shape[-1]
    Dout = W_t.shape[-1]

    # Lane-dense feature / output dims.  N: pad to 128 for N >= 64 (lane-dense A
    # loads and dense aggregation contraction); only to the bf16 sublane grain (16)
    # for tiny graphs, where 128-padding would inflate A's HBM traffic quadratically.
    N_pad = _round_up(N, 128) if N >= 64 else _round_up(N, 16)
    Din_pad = _round_up(Din, 128)
    Dout_pad = _round_up(Dout, 128)

    block_b, tm = _choose_tiling(B, N_pad, Din_pad, Dout_pad)
    assert B % block_b == 0 and N_pad % tm == 0

    bf16 = jnp.bfloat16
    # bf16 inputs (f32 accumulation inside the kernel). Padding only where needed.
    A_p = _pad_to(A.astype(bf16), (B, N_pad, N_pad))
    x_p = _pad_to(x0.astype(bf16), (B, N_pad, Din_pad)).reshape(B * N_pad, Din_pad)
    W_p = _pad_to(W_t.astype(bf16), (Din_pad, Dout_pad))
    b_p = _pad_to(bias.astype(jnp.float32).reshape(1, Dout), (1, Dout_pad))

    grid = (B // block_b, N_pad // tm)

    out_padded = pl.pallas_call(
        _gcn_kernel,
        out_shape=jax.ShapeDtypeStruct((B, N_pad, Dout_pad), jnp.float32),
        grid_spec=pltpu.PrefetchScalarGridSpec(
            num_scalar_prefetch=0,
            grid=grid,
            in_specs=[
                pl.BlockSpec((block_b, tm, N_pad), lambda b, r: (b, r, 0)),
                pl.BlockSpec((block_b * N_pad, Din_pad), lambda b, r: (b, 0)),
                # Constant block index => W / bias stay resident, no re-DMA per step.
                pl.BlockSpec((Din_pad, Dout_pad), lambda b, r: (0, 0)),
                pl.BlockSpec((1, Dout_pad), lambda b, r: (0, 0)),
            ],
            out_specs=pl.BlockSpec((block_b, tm, Dout_pad), lambda b, r: (b, r, 0)),
            scratch_shapes=[pltpu.VMEM((block_b, N_pad, Dout_pad), bf16)],
        ),
        compiler_params=pltpu.CompilerParams(
            dimension_semantics=("parallel", "arbitrary"),
            vmem_limit_bytes=_VMEM_LIMIT_BYTES,
        ),
    )(A_p, x_p, W_p, b_p)

    # Strip zero-padding; padded rows/lanes never reach downstream consumers.
    return out_padded[:, :N, :Dout]


def gcn_reference(A, x0, W_t, bias):
    ax = jnp.einsum("bij,bjd->bid", A, x0)
    x = ax @ W_t + bias
    return jnp.tanh(x) - 2.0 / (x * x + 1.0)


if __name__ == "__main__":
    # Small shapes consistent with the module's forward.
    B, N = 2, 16
    in_dim, out_dim = 32, 32

    key = jax.random.PRNGKey(0)
    k_a, k_x, k_w, k_b = jax.random.split(key, 4)

    # Adjacency-like matrix and node features.
    A = jax.random.uniform(k_a, (B, N, N), dtype=jnp.float32)
    x0 = jax.random.normal(k_x, (B, N, in_dim), dtype=jnp.float32)

    # Deterministic parameter init mirroring reset_parameters():
    #   weight ~ U(-1/sqrt(out_dim), 1/sqrt(out_dim)),  shape [out_dim, in_dim]
    #   bias keeps PyTorch Linear default ~ U(-1/sqrt(in_dim), 1/sqrt(in_dim))
    stdv_w = 1.0 / math.sqrt(out_dim)
    W = jax.random.uniform(k_w, (out_dim, in_dim), minval=-stdv_w, maxval=stdv_w,
                           dtype=jnp.float32)
    stdv_b = 1.0 / math.sqrt(in_dim)
    bias = jax.random.uniform(k_b, (out_dim,), minval=-stdv_b, maxval=stdv_b,
                              dtype=jnp.float32)

    W_t = W.T  # [in_dim, out_dim] so the kernel does (x0 @ W_t), then A @ (.)

    out = jax.block_until_ready(gcn_forward(A, x0, W_t, bias))

    ref = gcn_reference(A, x0, W_t, bias)
    assert out.shape == (B, N, out_dim)
    err = jnp.max(jnp.abs(out - ref))
    # Tolerance reflects bf16 inputs (inference-grade) + EUP approx reciprocal,
    # compared against the full-f32 reference.
    assert jnp.allclose(out, ref, atol=6e-2, rtol=6e-2), f"max abs err {err}"

    print("KERNEL_OK")
</pallas_src>

<mosaic_0001>
module attributes {stable_mosaic.version = 11 : i64} {
  func.func @_gcn_kernel(%arg0: i32, %arg1: i32, %arg2: memref<1x16x16xbf16, #tpu.memory_space<vmem>>, %arg3: memref<16x128xbf16, #tpu.memory_space<vmem>>, %arg4: memref<128x128xbf16, #tpu.memory_space<vmem>>, %arg5: memref<1x128xf32, #tpu.memory_space<vmem>>, %arg6: memref<1x16x128xf32, #tpu.memory_space<vmem>>, %arg7: memref<1x16x128xbf16, #tpu.memory_space<vmem>>) attributes {dimension_semantics = [#tpu.dimension_semantics<parallel>, #tpu.dimension_semantics<arbitrary>], iteration_bounds = array<i64: 2, 1>, scalar_prefetch = 0 : i64, scratch_operands = 1 : i64, tpu.core_type = #tpu.core_type<tc>, window_params = [{transform_indices = @transform_0, window_bounds = array<i64: 1, 16, 16>}, {transform_indices = @transform_1, window_bounds = array<i64: 16, 128>}, {pipeline_mode = #tpu.pipeline_mode<synchronous>, transform_indices = @transform_2, window_bounds = array<i64: 128, 128>}, {pipeline_mode = #tpu.pipeline_mode<synchronous>, transform_indices = @transform_3, window_bounds = array<i64: 1, 128>}, {transform_indices = @transform_4, window_bounds = array<i64: 1, 16, 128>}]} {
    %c0_i32 = arith.constant 0 : i32
    %0 = arith.cmpi eq, %arg1, %c0_i32 : i32
    %1 = arith.extui %0 : i1 to i32
    %c0_i32_0 = arith.constant 0 : i32
    %2 = arith.cmpi ne, %1, %c0_i32_0 : i32
    scf.if %2 {
      %c0_13 = arith.constant 0 : index
      %c0_14 = arith.constant 0 : index
      %19 = vector.load %arg3[%c0_13, %c0_14] : memref<16x128xbf16, #tpu.memory_space<vmem>>, vector<16x128xbf16>
      %c0_15 = arith.constant 0 : index
      %c0_16 = arith.constant 0 : index
      %20 = vector.load %arg4[%c0_15, %c0_16] : memref<128x128xbf16, #tpu.memory_space<vmem>>, vector<128x128xbf16>
      %cst_17 = arith.constant dense<0.000000e+00> : vector<16x128xf32>
      %21 = tpu.matmul %19, %20, %cst_17 {dimension_numbers = #tpu.dot_dimension_numbers<[1], [0], [0], [1], [0, 0, 1, 1], [], []>} : vector<16x128xbf16>, vector<128x128xbf16>, vector<16x128xf32> -> vector<16x128xf32>
      %22 = vector.shape_cast %21 : vector<16x128xf32> to vector<1x16x128xf32>
      %23 = arith.truncf %22 : vector<1x16x128xf32> to vector<1x16x128xbf16>
      %c0_18 = arith.constant 0 : index
      %c0_19 = arith.constant 0 : index
      %c0_20 = arith.constant 0 : index
      %24 = vector.load %arg7[%c0_18, %c0_19, %c0_20] : memref<1x16x128xbf16, #tpu.memory_space<vmem>>, vector<1x16x128xbf16>
      tpu.vector_store %arg7[%c0_18, %c0_19, %c0_20], %23 {strides = array<i32>} : memref<1x16x128xbf16, #tpu.memory_space<vmem>>, vector<1x16x128xbf16>,
    } else {
    }
    %c0 = arith.constant 0 : index
    %c0_1 = arith.constant 0 : index
    %c0_2 = arith.constant 0 : index
    %3 = vector.load %arg2[%c0, %c0_1, %c0_2] : memref<1x16x16xbf16, #tpu.memory_space<vmem>>, vector<1x16x16xbf16>
    %c0_3 = arith.constant 0 : index
    %c0_4 = arith.constant 0 : index
    %c0_5 = arith.constant 0 : index
    %4 = vector.load %arg7[%c0_3, %c0_4, %c0_5] : memref<1x16x128xbf16, #tpu.memory_space<vmem>>, vector<1x16x128xbf16>
    "tpu.trace_start"() <{level = 10 : i32, message = "bij,bjd->bid"}> : () -> ()
    %cst = arith.constant dense<0.000000e+00> : vector<1x16x128xf32>
    %5 = tpu.matmul %3, %4, %cst {dimension_numbers = #tpu.dot_dimension_numbers<[2], [1], [1], [2], [0, 0, 0, 1, 1, 2], [0], [0]>} : vector<1x16x16xbf16>, vector<1x16x128xbf16>, vector<1x16x128xf32> -> vector<1x16x128xf32>
    "tpu.trace_stop"() : () -> ()
    %c0_6 = arith.constant 0 : index
    %c0_7 = arith.constant 0 : index
    %6 = vector.load %arg5[%c0_6, %c0_7] : memref<1x128xf32, #tpu.memory_space<vmem>>, vector<1x128xf32>
    %7 = vector.shape_cast %6 : vector<1x128xf32> to vector<1x1x128xf32>
    %8 = vector.broadcast %7 : vector<1x1x128xf32> to vector<1x16x128xf32>
    %9 = arith.addf %5, %8 : vector<1x16x128xf32>
    %10 = math.tanh %9 : vector<1x16x128xf32>
    %11 = arith.mulf %9, %9 : vector<1x16x128xf32>
    %cst_8 = arith.constant 1.000000e+00 : f32
    %12 = vector.broadcast %cst_8 : f32 to vector<1x16x128xf32>
    %13 = arith.addf %11, %12 : vector<1x16x128xf32>
    %14 = tpu.reciprocal %13 {approx = true} : vector<1x16x128xf32> -> vector<1x16x128xf32>
    %cst_9 = arith.constant 2.000000e+00 : f32
    %15 = vector.broadcast %cst_9 : f32 to vector<1x16x128xf32>
    %16 = arith.mulf %15, %14 : vector<1x16x128xf32>
    %17 = arith.subf %10, %16 : vector<1x16x128xf32>
    %c0_10 = arith.constant 0 : index
    %c0_11 = arith.constant 0 : index
    %c0_12 = arith.constant 0 : index
    %18 = vector.load %arg6[%c0_10, %c0_11, %c0_12] : memref<1x16x128xf32, #tpu.memory_space<vmem>>, vector<1x16x128xf32>
    tpu.vector_store %arg6[%c0_10, %c0_11, %c0_12], %17 {strides = array<i32>} : memref<1x16x128xf32, #tpu.memory_space<vmem>>, vector<1x16x128xf32>,
    return
  }
  func.func @transform_0(%arg0: i32, %arg1: i32) -> (i32, i32, i32) {
    %c0_i32 = arith.constant 0 : i32
    %c0_i32_0 = arith.constant 0 : i32
    return %arg0, %arg1, %c0_i32 : i32, i32, i32
  }
  func.func @transform_1(%arg0: i32, %arg1: i32) -> (i32, i32) {
    %c0_i32 = arith.constant 0 : i32
    %c0_i32_0 = arith.constant 0 : i32
    return %arg0, %c0_i32 : i32, i32
  }
  func.func @transform_2(%arg0: i32, %arg1: i32) -> (i32, i32) {
    %c0_i32 = arith.constant 0 : i32
    %c0_i32_0 = arith.constant 0 : i32
    %c0_i32_1 = arith.constant 0 : i32
    return %c0_i32, %c0_i32_0 : i32, i32
  }
  func.func @transform_3(%arg0: i32, %arg1: i32) -> (i32, i32) {
    %c0_i32 = arith.constant 0 : i32
    %c0_i32_0 = arith.constant 0 : i32
    %c0_i32_1 = arith.constant 0 : i32
    return %c0_i32, %c0_i32_0 : i32, i32
  }
  func.func @transform_4(%arg0: i32, %arg1: i32) -> (i32, i32, i32) {
    %c0_i32 = arith.constant 0 : i32
    %c0_i32_0 = arith.constant 0 : i32
    return %arg0, %arg1, %c0_i32 : i32, i32, i32
  }
}

</mosaic_0001>

<llo_original>
// kernel: tpu_custom_call.1
$region0: #{tpu_custom_call.1}
  #allocation0 [shape = 'u32[]', space=smem, size = 0x4, offset = 0x4, fixed_abs, tag = 'smem constant byte address 0x4 - core index']
  #allocation1 [shape = 'u32[144,128]{1,0:T(1,128)}', space=vmem, size = 0x12000, scoped, tag = 'internal scratch']
  #allocation2 [shape = 'bf16[1,16,128]{2,1,0:T(16,128)(2,1)}', space=vmem, size = 0x1000, scoped, tag = 'scratch operand']
  %s0 = inlined_call_operand.hbm [shape: bf16[2,16,16], index: 0, kind: input, shape index: {}]
  %s1 = inlined_call_operand.hbm [shape: bf16[32,128], index: 1, kind: input, shape index: {}]
  %s2 = inlined_call_operand.hbm [shape: bf16[128,128], index: 2, kind: input, shape index: {}]
  %s3 = inlined_call_operand.vmem [shape: f32[1,128], index: 3, kind: input, shape index: {}]
  %s4 = inlined_call_operand.hbm [shape: f32[2,16,128], index: 4, kind: output, shape index: {}]
  %s5 = sld [smem:[#allocation0]]
  $region65: #{tpu_custom_call.1} parent=0
    _
  %s7 = ssub.s32 1, %s5
  %s8 = scalar_select 0, %s7, %s5
  $region1: #{tpu_custom_call.1} parent=0
    #allocation3 [shape = 'u8[8192]{0}', space=vmem, size = 0x2000, scoped, tag = 'input window, operand 0']
    #allocation4 [shape = 's32[2]{0}', space=sflag, size = 0x8, scoped, tag = 'scoped memory for tpu_custom_call.1']
    #allocation5 [shape = 's32[2]{0}', space=sflag, size = 0x8, scoped, tag = 'scoped memory for tpu_custom_call.1']
    #allocation6 [shape = 'u8[8192]{0}', space=vmem, size = 0x2000, scoped, tag = 'input window, operand 1']
    #allocation7 [shape = 's32[2]{0}', space=sflag, size = 0x8, scoped, tag = 'scoped memory for tpu_custom_call.1']
    #allocation8 [shape = 'u8[32768]{0}', space=vmem, size = 0x8000, scoped, tag = 'input window, operand 2, single buffered']
    #allocation9 [shape = 'u8[16384]{0}', space=vmem, size = 0x4000, scoped, tag = 'output window, operand 0']
    %9 = vsyncpa [#allocation4], 0
    %s10 = scalar_lea.sflag [#allocation4], 1
    %11 = vsyncpa %s10, 0
    %12 = vsyncpa [#allocation7], 0
    %s13 = scalar_lea.sflag [#allocation7], 1
    %14 = vsyncpa %s13, 0
    %15 = vsyncpa [#allocation5], 0
    %s16 = scalar_lea.sflag [#allocation5], 1
    %17 = vsyncpa %s16, 0
    loop: start=0, step=1, limit=4
    $region2: #{tpu_custom_call.1} parent=1 // loop_pre_header
      _
    $region3: #{tpu_custom_call.1} parent=1 // loop_header
      %s19 = sphi 0, %s23
      %p20 = scmp.ge.s32.totalorder %s19, 4
      %s26 = sphi 0, %s38
      %s27 = sphi 0, %s34
      %s28 = sphi 0, %s26
      %s29 = sphi 0, %s27
      %s30 = sphi 0, %s28
      %s31 = sphi 0, %s29
      %s43 = sphi 0, %s45
      %s46 = sphi 0, %s43
      %s47 = sphi 0, %s46
      %s63 = sphi 0, %s47
      %s69 = sphi 0, %s71
      %s72 = sphi 0, %s69
      %s73 = sphi 0, %s72
      %s89 = sphi 0, %s73
      %s93 = sphi 0, %s93
      %s95 = sphi 0, %s93
      %s96 = sphi 0, %s95
      %s110 = sphi 0, %s96
      %s114 = sphi 0, %s114
      %s116 = sphi 0, %s114
      %s117 = sphi 0, %s116
      %s131 = sphi 0, %s117
      %s139 = sphi 0, %s141
      %s142 = sphi 0, %s139
      %s143 = sphi 0, %s142
      %s159 = sphi 0, %s143
    $region4: #{tpu_custom_call.1} parent=1 // loop_header_branch
      %22 = sbr.rel (%p20) target = $region8
    $region5: #{tpu_custom_call.1} parent=1 // loop_body
      %s24 = ssub.s32 %s19, 1
      %s25 = ssub.s32 %s19, 2
      %s32 = sadd.s32 1, %s27
      %p33 = scmp.ge.s32.totalorder %s32, 1
      %s34 = scalar_select %p33, 0, %s32
      %s35 = sadd.s32 1, %s26
      %s36 = scalar_select %p33, %s35, %s26
      %p37 = scmp.ge.s32.totalorder %s36, 2
      %s38 = scalar_select %p37, 0, %s36
      %s39 = ssub.s32 %s26, %s38
      %s40 = ssub.s32 %s27, %s34
      %s41 = sor.u32 %s39, %s40
      %p42 = scmp.eq.s32.totalorder %s41, 0
      %s44 = sadd.s32 %s43, 1
      %s45 = scalar_select %p42, %s43, %s44
      %p48 = pneg %p42
      %p49 = scmp.eq.s32.totalorder %s19, 1
      %p50 = por %p48, %p49
      %p51 = scmp.ne.s32.totalorder %s43, %s46
      %p52 = scmp.eq.s32.totalorder %s19, 0
      %p53 = por %p51, %p52
      %p54 = scmp.ne.s32.totalorder %s43, %s46
      %p55 = scmp.eq.s32.totalorder %s24, 1
      %p56 = por %p54, %p55
      %p57 = scmp.ne.s32.totalorder %s46, %s47
      %p58 = scmp.eq.s32.totalorder %s24, 0
      %p59 = por %p57, %p58
      %p60 = scmp.ne.s32.totalorder %s46, %s47
      %p61 = scmp.eq.s32.totalorder %s25, 1
      %p62 = por %p60, %p61
      %p64 = scmp.ne.s32.totalorder %s47, %s63
      %p65 = scmp.eq.s32.totalorder %s25, 0
      %p66 = por %p64, %p65
      %s67 = ssub.s32 %s26, %s38
      %p68 = scmp.eq.s32.totalorder %s67, 0
      %s70 = sadd.s32 %s69, 1
      %s71 = scalar_select %p68, %s69, %s70
      %p74 = pneg %p68
      %p75 = scmp.eq.s32.totalorder %s19, 1
      %p76 = por %p74, %p75
      %p77 = scmp.ne.s32.totalorder %s69, %s72
      %p78 = scmp.eq.s32.totalorder %s19, 0
      %p79 = por %p77, %p78
      %p80 = scmp.ne.s32.totalorder %s69, %s72
      %p81 = scmp.eq.s32.totalorder %s24, 1
      %p82 = por %p80, %p81
      %p83 = scmp.ne.s32.totalorder %s72, %s73
      %p84 = scmp.eq.s32.totalorder %s24, 0
      %p85 = por %p83, %p84
      %p86 = scmp.ne.s32.totalorder %s72, %s73
      %p87 = scmp.eq.s32.totalorder %s25, 1
      %p88 = por %p86, %p87
      %p90 = scmp.ne.s32.totalorder %s73, %s89
      %p91 = scmp.eq.s32.totalorder %s25, 0
      %p92 = por %p90, %p91
      %s94 = sadd.s32 %s93, 1
      %p97 = scmp.eq.s32.totalorder %s19, 1
      %p98 = scmp.ne.s32.totalorder %s93, %s95
      %p99 = scmp.eq.s32.totalorder %s19, 0
      %p100 = por %p98, %p99
      %p101 = scmp.ne.s32.totalorder %s93, %s95
      %p102 = scmp.eq.s32.totalorder %s24, 1
      %p103 = por %p101, %p102
      %p104 = scmp.ne.s32.totalorder %s95, %s96
      %p105 = scmp.eq.s32.totalorder %s24, 0
      %p106 = por %p104, %p105
      %p107 = scmp.ne.s32.totalorder %s95, %s96
      %p108 = scmp.eq.s32.totalorder %s25, 1
      %p109 = por %p107, %p108
      %p111 = scmp.ne.s32.totalorder %s96, %s110
      %p112 = scmp.eq.s32.totalorder %s25, 0
      %p113 = por %p111, %p112
      %s115 = sadd.s32 %s114, 1
      %p118 = scmp.eq.s32.totalorder %s19, 1
      %p119 = scmp.ne.s32.totalorder %s114, %s116
      %p120 = scmp.eq.s32.totalorder %s19, 0
      %p121 = por %p119, %p120
      %p122 = scmp.ne.s32.totalorder %s114, %s116
      %p123 = scmp.eq.s32.totalorder %s24, 1
      %p124 = por %p122, %p123
      %p125 = scmp.ne.s32.totalorder %s116, %s117
      %p126 = scmp.eq.s32.totalorder %s24, 0
      %p127 = por %p125, %p126
      %p128 = scmp.ne.s32.totalorder %s116, %s117
      %p129 = scmp.eq.s32.totalorder %s25, 1
      %p130 = por %p128, %p129
      %p132 = scmp.ne.s32.totalorder %s117, %s131
      %p133 = scmp.eq.s32.totalorder %s25, 0
      %p134 = por %p132, %p133
      %s135 = ssub.s32 %s26, %s38
      %s136 = ssub.s32 %s27, %s34
      %s137 = sor.u32 %s135, %s136
      %p138 = scmp.eq.s32.totalorder %s137, 0
      %s140 = sadd.s32 %s139, 1
      %s141 = scalar_select %p138, %s139, %s140
      %p144 = pneg %p138
      %p145 = scmp.eq.s32.totalorder %s19, 1
      %p146 = por %p144, %p145
      %p147 = scmp.ne.s32.totalorder %s139, %s142
      %p148 = scmp.eq.s32.totalorder %s19, 0
      %p149 = por %p147, %p148
      %p150 = scmp.ne.s32.totalorder %s139, %s142
      %p151 = scmp.eq.s32.totalorder %s24, 1
      %p152 = por %p150, %p151
      %p153 = scmp.ne.s32.totalorder %s142, %s143
      %p154 = scmp.eq.s32.totalorder %s24, 0
      %p155 = por %p153, %p154
      %p156 = scmp.ne.s32.totalorder %s142, %s143
      %p157 = scmp.eq.s32.totalorder %s25, 1
      %p158 = por %p156, %p157
      %p160 = scmp.ne.s32.totalorder %s143, %s159
      %p161 = scmp.eq.s32.totalorder %s25, 0
      %p162 = por %p160, %p161
      %p163 = scmp.le.s32.totalorder 1, %s19
      %p164 = scmp.lt.s32.totalorder %s19, 3
      %p165 = pnand %p163, %p164
      %p166 = pneg %p165
      // Predicated region
      $region9: #{tpu_custom_call.1} parent=5 // pred_check
        _
      $region10: #{tpu_custom_call.1} parent=5 // pred_check_branch
        %168 = sbr.rel (%p165) target = $region12
      $region11: #{tpu_custom_call.1} parent=5 // pred_region
        %s169 = ssub.s32 %s19, 1
        // Predicated region
        $region13: #{tpu_custom_call.1} parent=11 // pred_check
          %p170 = pneg %p106
        $region14: #{tpu_custom_call.1} parent=11 // pred_check_branch
          %172 = sbr.rel (%p170) target = $region16
        $region15: #{tpu_custom_call.1} parent=11 // pred_region
          %s174 = ssub.s32 1024, 1024
          %175 = vsyncadd [#allocation7], %s174
          %s176 = sshll.u32 [#allocation8], 4
          %s177 = int_to_ptr.vmem [resolvable:$true] %s176
          %182 = dma.hbm_to_vmem [thread:$0]  %s2, 1024, %s177, [#allocation7], 64, 64, 4
        $region16: #{tpu_custom_call.1} parent=11 // pred_fallthru
          _
        // Predicated region
        $region17: #{tpu_custom_call.1} parent=11 // pred_check
          %p183 = pneg %p127
        $region18: #{tpu_custom_call.1} parent=11 // pred_check_branch
          %185 = sbr.rel (%p183) target = $region20
        $region19: #{tpu_custom_call.1} parent=11 // pred_region
          _
        $region20: #{tpu_custom_call.1} parent=11 // pred_fallthru
          _
      $region12: #{tpu_custom_call.1} parent=5 // pred_fallthru
        _
      %p186 = scmp.lt.s32.totalorder %s19, 2
      // Predicated region
      $region21: #{tpu_custom_call.1} parent=5 // pred_check
        %p187 = pneg %p186
      $region22: #{tpu_custom_call.1} parent=5 // pred_check_branch
        %189 = sbr.rel (%p187) target = $region24
      $region23: #{tpu_custom_call.1} parent=5 // pred_region
        // Predicated region
        $region25: #{tpu_custom_call.1} parent=23 // pred_check
          %p190 = pneg %p53
        $region26: #{tpu_custom_call.1} parent=23 // pred_check_branch
          %192 = sbr.rel (%p190) target = $region28
        $region27: #{tpu_custom_call.1} parent=23 // pred_region
          %s193 = sand.u32 %s43, 1
          %s194 = scalar_lea.sflag [#allocation4], %s193
          %s195 = sand.u32 %s43, 1
          %s196 = smul.addr %s195, 8
          %s197 = scalar_lea.vmem [#allocation3], %s196
          %s198 = smul.u32 2, %s27
          %s200 = ssub.s32 128, 128
          %201 = vsyncadd %s194, %s200
          %s202 = smul.addr %s26, 2
          %s203 = sadd.s32 %s198, %s202
          %s204 = smul.addr %s203, 64
          %s205 = scalar_lea.hbm %s0, %s204
          %s206 = sshll.u32 %s197, 4
          %s207 = int_to_ptr.vmem [resolvable:$true] %s206
          %212 = dma.hbm_to_vmem [thread:$0]  %s205, 128, %s207, %s194, 64, 64, 4
        $region28: #{tpu_custom_call.1} parent=23 // pred_fallthru
          _
        // Predicated region
        $region29: #{tpu_custom_call.1} parent=23 // pred_check
          %p213 = pneg %p79
        $region30: #{tpu_custom_call.1} parent=23 // pred_check_branch
          %215 = sbr.rel (%p213) target = $region32
        $region31: #{tpu_custom_call.1} parent=23 // pred_region
          %s216 = sand.u32 %s19, 1
          %s217 = scalar_lea.sflag [#allocation7], %s216
          %s218 = sand.u32 %s69, 1
          %s219 = smul.addr %s218, 8
          %s220 = scalar_lea.vmem [#allocation6], %s219
          %s221 = smul.u32 2, %s26
          %s223 = ssub.s32 128, 128
          %224 = vsyncadd %s217, %s223
          %s225 = smul.addr %s221, 64
          %s226 = scalar_lea.hbm %s1, %s225
          %s227 = sshll.u32 %s220, 4
          %s228 = int_to_ptr.vmem [resolvable:$true] %s227
          %233 = dma.hbm_to_vmem [thread:$0]  %s226, 128, %s228, %s217, 64, 64, 4
        $region32: #{tpu_custom_call.1} parent=23 // pred_fallthru
          _
      $region24: #{tpu_custom_call.1} parent=5 // pred_fallthru
        _
      %p234 = scmp.le.s32.totalorder 1, %s19
      %p235 = scmp.lt.s32.totalorder %s19, 3
      %p236 = pnand %p234, %p235
      %p237 = pneg %p236
      // Predicated region
      $region33: #{tpu_custom_call.1} parent=5 // pred_check
        _
      $region34: #{tpu_custom_call.1} parent=5 // pred_check_branch
        %239 = sbr.rel (%p236) target = $region36
      $region35: #{tpu_custom_call.1} parent=5 // pred_region
        %s240 = ssub.s32 %s19, 1
        %s241 = sand.u32 %s46, 1
        %s242 = scalar_lea.sflag [#allocation4], %s241
        %s243 = sand.u32 %s46, 1
        %s244 = smul.addr %s243, 8
        %s245 = scalar_lea.vmem [#allocation3], %s244
        // Predicated region
        $region37: #{tpu_custom_call.1} parent=35 // pred_check
          %p246 = pneg %p59
        $region38: #{tpu_custom_call.1} parent=35 // pred_check_branch
          %248 = sbr.rel (%p246) target = $region40
        $region39: #{tpu_custom_call.1} parent=35 // pred_region
          %249 = dma.done %s242, 128
        $region40: #{tpu_custom_call.1} parent=35 // pred_fallthru
          _
        %s250 = sand.u32 %s24, 1
        %s251 = scalar_lea.sflag [#allocation7], %s250
        %s252 = sand.u32 %s72, 1
        %s253 = smul.addr %s252, 8
        %s254 = scalar_lea.vmem [#allocation6], %s253
        // Predicated region
        $region41: #{tpu_custom_call.1} parent=35 // pred_check
          %p255 = pneg %p85
        $region42: #{tpu_custom_call.1} parent=35 // pred_check_branch
          %257 = sbr.rel (%p255) target = $region44
        $region43: #{tpu_custom_call.1} parent=35 // pred_region
          %258 = dma.done %s251, 128
        $region44: #{tpu_custom_call.1} parent=35 // pred_fallthru
          _
        // Predicated region
        $region45: #{tpu_custom_call.1} parent=35 // pred_check
          %p259 = pneg %p106
        $region46: #{tpu_custom_call.1} parent=35 // pred_check_branch
          %261 = sbr.rel (%p259) target = $region48
        $region47: #{tpu_custom_call.1} parent=35 // pred_region
          %262 = dma.done [#allocation7], 1024
        $region48: #{tpu_custom_call.1} parent=35 // pred_fallthru
          _
        %s263 = sand.u32 %s46, 1
        %s264 = scalar_lea.sflag [#allocation4], %s263
        %s265 = sand.u32 %s46, 1
        %s266 = smul.addr %s265, 8
        %s267 = scalar_lea.vmem [#allocation3], %s266
        %p268 = pneg %p59
        %p269 = pneg %p56
        %s270 = sand.u32 %s24, 1
        %s271 = scalar_lea.sflag [#allocation7], %s270
        %s272 = sand.u32 %s72, 1
        %s273 = smul.addr %s272, 8
        %s274 = scalar_lea.vmem [#allocation6], %s273
        %p275 = pneg %p85
        %p276 = pneg %p82
        %p277 = pneg %p106
        %p278 = pneg %p103
        %p279 = pneg %p127
        %p280 = pneg %p124
        %p281 = pneg %p155
        %p282 = pneg %p152
        %s283 = sand.u32 %s142, 1
        %s284 = scalar_lea.sflag [#allocation5], %s283
        %s285 = sand.u32 %s142, 1
        %s286 = smul.addr %s285, 16
        %s287 = scalar_lea.vmem [#allocation9], %s286
        %s288 = smul.u32 2, %s29
        %s289 = smul.u32 2, %s28
        %s290 = smul.u32 2, %s29
        %p292 = scmp.eq.s32.totalorder %s29, 0
        // Predicated region
        $region49: #{tpu_custom_call.1} parent=35 // pred_check
          %p293 = pneg %p292
        $region50: #{tpu_custom_call.1} parent=35 // pred_check_branch
          %295 = sbr.rel (%p293) target = $region52
        $region51: #{tpu_custom_call.1} parent=35 // pred_region
          %v296 = vld [vmem:[%s254] sm:$0xf]
          %v297 = vld [vmem:[%s254 + $0x4] sm:$0xf]
          %v298 = vld [vmem:[#allocation8] sm:$0xf]
          %v299 = vld [vmem:[#allocation8 + $0x4] sm:$0xf]
          %v300 = vld [vmem:[#allocation8 + $0x8] sm:$0xf]
          %v301 = vld [vmem:[#allocation8 + $0xc] sm:$0xf]
          %v302 = vld [vmem:[#allocation8 + $0x10] sm:$0xf]
          %v303 = vld [vmem:[#allocation8 + $0x14] sm:$0xf]
          %v304 = vld [vmem:[#allocation8 + $0x18] sm:$0xf]
          %v305 = vld [vmem:[#allocation8 + $0x1c] sm:$0xf]
          %v306 = vld [vmem:[#allocation8 + $0x20] sm:$0xf]
          %v307 = vld [vmem:[#allocation8 + $0x24] sm:$0xf]
          %v308 = vld [vmem:[#allocation8 + $0x28] sm:$0xf]
          %v309 = vld [vmem:[#allocation8 + $0x2c] sm:$0xf]
          %v310 = vld [vmem:[#allocation8 + $0x30] sm:$0xf]
          %v311 = vld [vmem:[#allocation8 + $0x34] sm:$0xf]
          %v312 = vld [vmem:[#allocation8 + $0x38] sm:$0xf]
          %v313 = vld [vmem:[#allocation8 + $0x3c] sm:$0xf]
          %v316 = vunpack.c.l.b16 %v296
          %v317 = vunpack.c.l.b16 %v297
          %v318 = vpack.c.b16 %v317, %v316
          %v336 = vunpack.c.l.b16 %v298
          %v337 = vunpack.c.l.b16 %v299
          %v338 = vunpack.c.l.b16 %v300
          %v339 = vunpack.c.l.b16 %v301
          %v340 = vunpack.c.l.b16 %v302
          %v341 = vunpack.c.l.b16 %v303
          %v342 = vunpack.c.l.b16 %v304
          %v343 = vunpack.c.l.b16 %v305
          %v344 = vunpack.c.l.b16 %v306
          %v345 = vunpack.c.l.b16 %v307
          %v346 = vunpack.c.l.b16 %v308
          %v347 = vunpack.c.l.b16 %v309
          %v348 = vunpack.c.l.b16 %v310
          %v349 = vunpack.c.l.b16 %v311
          %v350 = vunpack.c.l.b16 %v312
          %v351 = vunpack.c.l.b16 %v313
          %v352 = vpack.c.b16 %v337, %v336
          %v353 = vpack.c.b16 %v339, %v338
          %v354 = vpack.c.b16 %v341, %v340
          %v355 = vpack.c.b16 %v343, %v342
          %v356 = vpack.c.b16 %v345, %v344
          %v357 = vpack.c.b16 %v347, %v346
          %v358 = vpack.c.b16 %v349, %v348
          %v359 = vpack.c.b16 %v351, %v350
          %368 = vmatprep.subr.bf16.mxu0 0
          %369 = vmatpush1.bf16.msra.mxu0 %v352
          %370 = vmatprep.subr.bf16.mxu0 0
          %371 = vmatpush1.bf16.msra.mxu0 %v353
          %372 = vmatprep.subr.bf16.mxu0 0
          %373 = vmatpush1.bf16.msra.mxu0 %v354
          %374 = vmatprep.subr.bf16.mxu0 0
          %375 = vmatpush1.bf16.msra.mxu0 %v355
          %376 = vmatprep.subr.bf16.mxu0 0
          %377 = vmatpush1.bf16.msra.mxu0 %v356
          %378 = vmatprep.subr.bf16.mxu0 0
          %379 = vmatpush1.bf16.msra.mxu0 %v357
          %380 = vmatprep.subr.bf16.mxu0 0
          %381 = vmatpush1.bf16.msra.mxu0 %v358
          %382 = vmatprep.subr.bf16.mxu0 0
          %383 = vmatpush1.bf16.msra.mxu0 %v359
          %384 = vmatprep.subr.bf16.mxu0 0
          %385 = vmatpush1.bf16.msra.mxu0 0
          %386 = vmatprep.subr.bf16.mxu0 0
          %387 = vmatpush1.bf16.msra.mxu0 0
          %388 = vmatprep.subr.bf16.mxu0 0
          %389 = vmatpush1.bf16.msra.mxu0 0
          %390 = vmatprep.subr.bf16.mxu0 0
          %391 = vmatpush1.bf16.msra.mxu0 0
          %392 = vmatprep.subr.bf16.mxu0 0
          %393 = vmatpush1.bf16.msra.mxu0 0
          %394 = vmatprep.subr.bf16.mxu0 0
          %395 = vmatpush1.bf16.msra.mxu0 0
          %396 = vmatprep.subr.bf16.mxu0 0
          %397 = vmatpush1.bf16.msra.mxu0 0
          %398 = vmatprep.subr.bf16.mxu0 0
          %399 = vmatpush1.bf16.msra.mxu0 0
          %400 = vmatprep.mubr.bf16.mxu0 0
          %401 = vmatmul.mubr.bf16.gmra.mrb[0].mxu0 %v318
          %v402 = vpop.f32.mrb[0].mxu0
          %v403 = vadd.f32 0.0, %v402
          %v404 = vpop.f32.mrb[0].mxu0
          %v405 = vpop.f32.mrb[0].mxu0
          %v406 = vadd.f32 0.0, %v405
          %v407 = vpop.f32.mrb[0].mxu0
          %408 = vdwg.mxu0
          %v409 = vpack.c.bf16 %v406, %v403
          %410 = vst [vmem:[#allocation2] sm:$0xff] %v409
        $region52: #{tpu_custom_call.1} parent=35 // pred_fallthru
          _
        %v411 = vld [vmem:[%s245] sm:$0xf]
        %v412 = vld [vmem:[%s245 + $0x4] sm:$0xf]
        %v413 = vld [vmem:[#allocation2] sm:$0xff]
        %v414 = vld [vmem:[%s3] sm:$0x1]
        %v416 = vlaneseq
        %v417 = vshrl.u32 %v416, 7
        %v418 = vsub.s32 0, %v417
        %v419 = vrot.slane %v414, %v418
        %v423 = vunpack.c.l.b16 %v411
        %v424 = vunpack.c.l.b16 %v412
        %v425 = vpack.c.b16 %v424, %v423
        %vm426 = vcmask 130048
        %v428 = vsel %vm426, %v425, 0
        %430 = vmatprep.subr.bf16.mxu0 0
        %431 = vmatpush1.bf16.msra.mxu0 %v413
        %432 = vmatprep.subr.bf16.mxu0 0
        %433 = vmatpush1.bf16.msra.mxu0 0
        %434 = vmatprep.subr.bf16.mxu0 0
        %435 = vmatpush1.bf16.msra.mxu0 0
        %436 = vmatprep.subr.bf16.mxu0 0
        %437 = vmatpush1.bf16.msra.mxu0 0
        %438 = vmatprep.subr.bf16.mxu0 0
        %439 = vmatpush1.bf16.msra.mxu0 0
        %440 = vmatprep.subr.bf16.mxu0 0
        %441 = vmatpush1.bf16.msra.mxu0 0
        %442 = vmatprep.subr.bf16.mxu0 0
        %443 = vmatpush1.bf16.msra.mxu0 0
        %444 = vmatprep.subr.bf16.mxu0 0
        %445 = vmatpush1.bf16.msra.mxu0 0
        %446 = vmatprep.subr.bf16.mxu0 0
        %447 = vmatpush1.bf16.msra.mxu0 0
        %448 = vmatprep.subr.bf16.mxu0 0
        %449 = vmatpush1.bf16.msra.mxu0 0
        %450 = vmatprep.subr.bf16.mxu0 0
        %451 = vmatpush1.bf16.msra.mxu0 0
        %452 = vmatprep.subr.bf16.mxu0 0
        %453 = vmatpush1.bf16.msra.mxu0 0
        %454 = vmatprep.subr.bf16.mxu0 0
        %455 = vmatpush1.bf16.msra.mxu0 0
        %456 = vmatprep.subr.bf16.mxu0 0
        %457 = vmatpush1.bf16.msra.mxu0 0
        %458 = vmatprep.subr.bf16.mxu0 0
        %459 = vmatpush1.bf16.msra.mxu0 0
        %460 = vmatprep.subr.bf16.mxu0 0
        %461 = vmatpush1.bf16.msra.mxu0 0
        %462 = vmatprep.mubr.bf16.mxu0 0
        %463 = vmatmul.mubr.bf16.gmra.mrb[0].mxu0 %v428
        %v464 = vpop.f32.mrb[0].mxu0
        %v465 = vadd.f32 %v419, %v464
        %v466 = vpop.f32.mrb[0].mxu0
        %v467 = vpop.f32.mrb[0].mxu0
        %v468 = vadd.f32 %v419, %v467
        %v469 = vpop.f32.mrb[0].mxu0
        %470 = vdwg.mxu0
        %v471 = vtanh.pop %v465
        %v472 = vtanh.pop %v468
        %v473 = vmul.f32 %v465, %v465
        %v474 = vmul.f32 %v468, %v468
        %v475 = vadd.f32 %v473, 1.0
        %v476 = vadd.f32 %v474, 1.0
        %v477 = vrcp.pop %v475
        %v478 = vrcp.pop %v476
        %v479 = vmul.f32 %v477, 2.0
        %v480 = vmul.f32 %v478, 2.0
        %v481 = vsub.f32 %v471, %v479
        %v482 = vsub.f32 %v472, %v480
        %483 = vst [vmem:[%s287] sm:$0xff] %v481
        %484 = vst [vmem:[%s287 + $0x8] sm:$0xff] %v482
        %s485 = sand.u32 %s142, 1
        %s486 = scalar_lea.sflag [#allocation5], %s485
        %s487 = sand.u32 %s142, 1
        %s488 = smul.addr %s487, 16
        %s489 = scalar_lea.vmem [#allocation9], %s488
        // Predicated region
        $region53: #{tpu_custom_call.1} parent=35 // pred_check
          %p490 = pneg %p152
        $region54: #{tpu_custom_call.1} parent=35 // pred_check_branch
          %492 = sbr.rel (%p490) target = $region56
        $region55: #{tpu_custom_call.1} parent=35 // pred_region
          %s493 = smul.u32 2, %s29
          %s495 = ssub.s32 256, 256
          %496 = vsyncadd %s486, %s495
          %s497 = smul.addr %s28, 2
          %s498 = sadd.s32 %s493, %s497
          %s499 = smul.addr %s498, 128
          %s500 = scalar_lea.hbm %s4, %s499
          %s501 = sshll.u32 %s489, 4
          %s502 = int_to_ptr.vmem [resolvable:$true] %s501
          %507 = dma.vmem_to_hbm [thread:$0]  %s502, 256, %s500, %s486, 128, 128, 8
        $region56: #{tpu_custom_call.1} parent=35 // pred_fallthru
          _
      $region36: #{tpu_custom_call.1} parent=5 // pred_fallthru
        _
      %p508 = scmp.le.s32.totalorder 2, %s19
      // Predicated region
      $region57: #{tpu_custom_call.1} parent=5 // pred_check
        %p509 = pneg %p508
      $region58: #{tpu_custom_call.1} parent=5 // pred_check_branch
        %511 = sbr.rel (%p509) target = $region60
      $region59: #{tpu_custom_call.1} parent=5 // pred_region
        %s512 = ssub.s32 %s19, 2
        // Predicated region
        $region61: #{tpu_custom_call.1} parent=59 // pred_check
          %p513 = pneg %p158
        $region62: #{tpu_custom_call.1} parent=59 // pred_check_branch
          %515 = sbr.rel (%p513) target = $region64
        $region63: #{tpu_custom_call.1} parent=59 // pred_region
          %s516 = sand.u32 %s143, 1
          %s517 = scalar_lea.sflag [#allocation5], %s516
          %s518 = sand.u32 %s143, 1
          %s519 = smul.addr %s518, 16
          %s520 = scalar_lea.vmem [#allocation9], %s519
          %521 = dma.done %s517, 256
        $region64: #{tpu_custom_call.1} parent=59 // pred_fallthru
          _
      $region60: #{tpu_custom_call.1} parent=5 // pred_fallthru
        _
    $region6: #{tpu_custom_call.1} parent=1 // loop_footer
      %s23 = sadd.s32 1, %s19
    $region7: #{tpu_custom_call.1} parent=1 // loop_footer_branch
      %18 = sbr.rel target = $region3
    $region8: #{tpu_custom_call.1} parent=1 // loop_exit
      _
    %522 = vsyncpa [#allocation4], 1
    %s523 = scalar_lea.sflag [#allocation4], 1
    %524 = vsyncpa %s523, 1
    %525 = vsyncpa [#allocation7], 1
    %s526 = scalar_lea.sflag [#allocation7], 1
    %527 = vsyncpa %s526, 1
    %528 = vsyncpa [#allocation5], 1
    %s529 = scalar_lea.sflag [#allocation5], 1
    %530 = vsyncpa %s529, 1

</llo_original>
